<compile_context>
chip_gen: v7x
topology: tpu7x:2x2x1
jax: 0.10.0
libtpu: 0.0.40
codegen_flags: <defaults>
</compile_context>

<pallas_src>
import functools

import jax
import jax.numpy as jnp
from jax import lax
from jax.experimental import pallas as pl
from jax.experimental.pallas import tpu as pltpu


# ---------------------------------------------------------------------------
# Kernel 1: pixel normalization (preprocess_image / self.normalizer)
#   lane layout: sublanes = image rows, lanes = W*C
# ---------------------------------------------------------------------------
def _normalize_kernel(img_ref, mean_ref, inv_std_ref, out_ref):
    out_ref[...] = (img_ref[...] - mean_ref[...]) * inv_std_ref[...]


def _pick_row_tile(total, target):
    """Largest multiple of 8 that divides `total` and is <= target (else total)."""
    if total <= target:
        return total
    t = (target // 8) * 8
    while t >= 8:
        if total % t == 0:
            return t
        t -= 8
    return total


def normalize_image(img_nhwc, pixel_mean, pixel_std):
    N, H, W, C = img_nhwc.shape
    WC = W * C
    x = img_nhwc.reshape(N, H, WC).astype(jnp.float32)
    mean_row = jnp.tile(pixel_mean.astype(jnp.float32), W).reshape(1, 1, WC)
    inv_std_row = jnp.tile(1.0 / pixel_std.astype(jnp.float32), W).reshape(1, 1, WC)
    th = _pick_row_tile(H, 128)
    out = pl.pallas_call(
        _normalize_kernel,
        out_shape=jax.ShapeDtypeStruct((N, H, WC), jnp.float32),
        grid=(N, H // th),
        in_specs=[
            pl.BlockSpec((1, th, WC), lambda n, h: (n, h, 0)),
            pl.BlockSpec((1, 1, WC), lambda n, h: (0, 0, 0)),
            pl.BlockSpec((1, 1, WC), lambda n, h: (0, 0, 0)),
        ],
        out_specs=pl.BlockSpec((1, th, WC), lambda n, h: (n, h, 0)),
        compiler_params=pltpu.CompilerParams(
            dimension_semantics=("parallel", "parallel")),
    )(x, mean_row, inv_std_row)
    return out.reshape(N, H, W, C)


# ---------------------------------------------------------------------------
# Kernel 2 (CBAM pass 1): row-tiled channel sum/max reduction of
#   fused = raw + seg @ w_adapt, finishing with the channel-attention MLP.
#   Ragged H*W tail is handled by Pallas edge blocks + explicit masking
#   (no host-side padding of the feature maps).
# ---------------------------------------------------------------------------
def _reduce_ca_kernel(raw_ref, seg_ref, w_ref, w1_ref, w2_ref, ca_ref, acc_ref,
                      *, hw):
    t = pl.program_id(1)
    tile = raw_ref.shape[1]
    C = acc_ref.shape[1]

    @pl.when(t == 0)
    def _init():
        acc_ref[pl.ds(0, 1), :] = jnp.zeros((1, C), jnp.float32)
        acc_ref[pl.ds(1, 1), :] = jnp.full((1, C), -jnp.inf, jnp.float32)

    # fused tile (adapter 1x1 conv fused in; never written to HBM)
    fused = raw_ref[0] + jnp.dot(seg_ref[0], w_ref[...],
                                 preferred_element_type=jnp.float32)   # (tile, C)
    row = t * tile + lax.broadcasted_iota(jnp.int32, fused.shape, 0)
    valid = row < hw                                                   # mask ragged tail
    acc_ref[pl.ds(0, 1), :] += jnp.sum(jnp.where(valid, fused, 0.0),
                                       axis=0, keepdims=True)
    acc_ref[pl.ds(1, 1), :] = jnp.maximum(
        acc_ref[pl.ds(1, 1), :],
        jnp.max(jnp.where(valid, fused, -jnp.inf), axis=0, keepdims=True))

    @pl.when(t == pl.num_programs(1) - 1)
    def _finalize():
        acc_ref[pl.ds(0, 1), :] = acc_ref[pl.ds(0, 1), :] * (1.0 / hw)
        stats = acc_ref[...]                                            # (2, C)
        h1 = jnp.maximum(
            jnp.dot(stats, w1_ref[...], preferred_element_type=jnp.float32), 0.0)
        o = jnp.dot(h1, w2_ref[...], preferred_element_type=jnp.float32)  # (2, C)
        # mlp(avg) + mlp(max) == sum over the stacked rows
        ca_ref[0] = jax.nn.sigmoid(jnp.sum(o, axis=0, keepdims=True))     # (1, C)


# ---------------------------------------------------------------------------
# Kernel 3 (CBAM pass 2): apply channel attention (adapter recomputed row-wise)
# and the 7x7 spatial attention as 7 banded MXU matmuls.
# ---------------------------------------------------------------------------
def _cbam_apply_kernel(raw_ref, seg_ref, w_ref, ca_ref, band_ref,
                       out_ref, xca_ref, pad_ref):
    H = raw_ref.shape[1]
    W = raw_ref.shape[2]
    Wp = W + 6

    w = w_ref[...]            # (Cs, C)
    ca = ca_ref[0]            # (1, C)

    def _row(h):
        fused_row = raw_ref[0, h] + jnp.dot(
            seg_ref[0, h], w, preferred_element_type=jnp.float32)      # (W, C)
        xca_ref[h] = fused_row * ca

    if H <= 64:
        # statically unrolled: gives the LLO scheduler full visibility
        for h in range(H):
            _row(h)
    else:
        def _body(h, carry):
            _row(h)
            return carry
        lax.fori_loop(0, H, _body, 0, unroll=8)

    x = xca_ref[...]                             # (H, W, C)
    s_avg = jnp.mean(x, axis=-1)                 # (H, W)  (XLU lane reduce)
    s_max = jnp.max(x, axis=-1)                  # (H, W)

    # padded stat maps: [avg | max] side by side on the lane axis;
    # the zero border only needs to be written once (scratch persists).
    @pl.when(pl.program_id(0) == 0)
    def _zero_border():
        pad_ref[...] = jnp.zeros_like(pad_ref)   # (H + 6, 2 * Wp)

    pad_ref[pl.ds(3, H), pl.ds(3, W)] = s_avg
    pad_ref[pl.ds(3, H), pl.ds(Wp + 3, W)] = s_max

    acc = jnp.zeros((H, W), jnp.float32)
    for dy in range(7):                          # 7 banded MXU matmuls
        acc = acc + jnp.dot(pad_ref[pl.ds(dy, H), :], band_ref[dy],
                            preferred_element_type=jnp.float32)

    sa = jax.nn.sigmoid(acc)                     # (H, W)
    out_ref[0] = x * sa[:, :, None]


def build_band(wconv, W):
    """Banded matrices turning the 7x7 x 2-channel conv into, per dy,
    one (H, 2*Wp) @ (2*Wp, W) matmul against the row-sliced padded stat maps."""
    Wp = W + 6
    j = jnp.arange(Wp)[:, None]               # padded-buffer column
    wcol = jnp.arange(W)[None, :]             # output column
    dx = j - wcol                             # tap index when 0 <= dx <= 6
    valid = (dx >= 0) & (dx < 7)
    dxc = jnp.clip(dx, 0, 6)
    band_avg = jnp.where(valid[None], wconv[:, :, 0][:, dxc], 0.0)   # (7, Wp, W)
    band_max = jnp.where(valid[None], wconv[:, :, 1][:, dxc], 0.0)   # (7, Wp, W)
    return jnp.concatenate([band_avg, band_max], axis=1)             # (7, 2*Wp, W)


# ---------------------------------------------------------------------------
# Level-wise fusion:  fused[lvl] = CBAM(raw[lvl] + seg_adapter[lvl](seg[lvl]))
# (features stay NHWC; no NCHW round trips, no host-side padding copies)
# ---------------------------------------------------------------------------
def fuse_level(raw_nhwc, seg_nhwc, params, *, tile_rows=512):
    N, H, W, C = raw_nhwc.shape
    Cs = seg_nhwc.shape[-1]
    hidden = params["w1"].shape[1]
    HW = H * W

    tile = min(tile_rows, HW)
    if tile != HW:
        tile = max(8, (tile // 8) * 8)
    nt = pl.cdiv(HW, tile)

    raw_f32 = raw_nhwc.astype(jnp.float32)
    seg_f32 = seg_nhwc.astype(jnp.float32)
    raw2 = raw_f32.reshape(N, HW, C)     # free reshapes (no padding copies)
    seg2 = seg_f32.reshape(N, HW, Cs)

    # ---- pass 1: tiled channel-attention reduction (adapter fused in) ----
    ca = pl.pallas_call(
        functools.partial(_reduce_ca_kernel, hw=HW),
        out_shape=jax.ShapeDtypeStruct((N, 1, C), jnp.float32),
        grid=(N, nt),
        in_specs=[
            pl.BlockSpec((1, tile, C), lambda n, t: (n, t, 0)),
            pl.BlockSpec((1, tile, Cs), lambda n, t: (n, t, 0)),
            pl.BlockSpec((Cs, C), lambda n, t: (0, 0)),
            pl.BlockSpec((C, hidden), lambda n, t: (0, 0)),
            pl.BlockSpec((hidden, C), lambda n, t: (0, 0)),
        ],
        out_specs=pl.BlockSpec((1, 1, C), lambda n, t: (n, 0, 0)),
        scratch_shapes=[pltpu.VMEM((2, C), jnp.float32)],
        compiler_params=pltpu.CompilerParams(
            dimension_semantics=("parallel", "arbitrary")),
    )(raw2, seg2, params["w_adapt"], params["w1"], params["w2"])

    # ---- pass 2: apply channel + spatial attention ----
    band = build_band(params["wconv"], W)        # (7, 2*(W+6), W)
    Wp2 = 2 * (W + 6)
    out = pl.pallas_call(
        _cbam_apply_kernel,
        out_shape=jax.ShapeDtypeStruct((N, H, W, C), jnp.float32),
        grid=(N,),
        in_specs=[
            pl.BlockSpec((1, H, W, C), lambda n: (n, 0, 0, 0)),
            pl.BlockSpec((1, H, W, Cs), lambda n: (n, 0, 0, 0)),
            pl.BlockSpec((Cs, C), lambda n: (0, 0)),
            pl.BlockSpec((1, 1, C), lambda n: (n, 0, 0)),
            pl.BlockSpec((7, Wp2, W), lambda n: (0, 0, 0)),
        ],
        out_specs=pl.BlockSpec((1, H, W, C), lambda n: (n, 0, 0, 0)),
        scratch_shapes=[
            pltpu.VMEM((H, W, C), jnp.float32),
            pltpu.VMEM((H + 6, Wp2), jnp.float32),
        ],
        compiler_params=pltpu.CompilerParams(
            dimension_semantics=("parallel",)),
    )(raw_f32, seg_f32, params["w_adapt"], ca, band)
    return out


# ---------------------------------------------------------------------------
# Pure-JAX reference (numerical sanity check of the fusion path)
# ---------------------------------------------------------------------------
def reference_fuse(raw, seg, params):
    x = raw + jnp.einsum("nhwc,cd->nhwd", seg, params["w_adapt"])
    avg = jnp.mean(x, axis=(1, 2))
    mx = jnp.max(x, axis=(1, 2))

    def mlp(v):
        return jnp.maximum(v @ params["w1"], 0.0) @ params["w2"]

    ca = jax.nn.sigmoid(mlp(avg) + mlp(mx))
    x_ca = x * ca[:, None, None, :]
    stats = jnp.stack([jnp.mean(x_ca, -1), jnp.max(x_ca, -1)], axis=-1)
    sa = jax.nn.sigmoid(
        lax.conv_general_dilated(
            stats, params["wconv"][..., None], (1, 1), "SAME",
            dimension_numbers=("NHWC", "HWIO", "NHWC"))[..., 0])
    return x_ca * sa[..., None]


def make_params(key, c_seg, c_out, reduction=16):
    k1, k2, k3, k4 = jax.random.split(key, 4)
    hidden = max(c_out // reduction, 1)
    return {
        "w_adapt": jax.random.normal(k1, (c_seg, c_out), jnp.float32) / jnp.sqrt(c_seg * 1.0),
        "w1": jax.random.normal(k2, (c_out, hidden), jnp.float32) / jnp.sqrt(c_out * 1.0),
        "w2": jax.random.normal(k3, (hidden, c_out), jnp.float32) / jnp.sqrt(hidden * 1.0),
        "wconv": jax.random.normal(k4, (7, 7, 2), jnp.float32) / jnp.sqrt(98.0),
    }


if __name__ == "__main__":
    key = jax.random.PRNGKey(0)
    N, C_IMG = 2, 3
    # lane-aligned demo channel widths: raw backbone C=128, DeepLab feature C=256
    C_RAW, C_SEG = 128, 256

    ks = jax.random.split(key, 8)
    ok = True

    # ---- preprocess_image (normalizer) ----
    image_nhwc = jax.random.uniform(ks[0], (N, 16, 16, C_IMG), jnp.float32) * 255.0
    pixel_mean = jnp.array([103.53, 116.28, 123.675], jnp.float32)
    pixel_std = jnp.array([57.375, 57.12, 58.395], jnp.float32)
    normed = normalize_image(image_nhwc, pixel_mean, pixel_std)
    jax.block_until_ready(normed)
    ref_norm = (image_nhwc - pixel_mean.reshape(1, 1, 1, 3)) / pixel_std.reshape(1, 1, 1, 3)
    if not jnp.allclose(normed, ref_norm, atol=1e-4, rtol=1e-5):
        ok = False
        print("MISMATCH: normalize")

    # ---- level-wise fusion: seg_adapter + CBAM (backbone outputs synthetic) ----
    levels = [
        ("res3", 16, 16, 128),   # 2 row-tiles: exercises cross-tile accumulation
        ("res4", 12, 12, 128),   # HW=144, tile=128: exercises masked ragged edge block
        ("res5", 8, 8, 512),     # single tile
    ]
    for i, (lvl, H, W, tr) in enumerate(levels):
        kr, ksg, kp = jax.random.split(ks[i + 1], 3)
        raw_feat = jax.random.normal(kr, (N, H, W, C_RAW), jnp.float32)
        seg_feat = jax.random.normal(ksg, (N, H, W, C_SEG), jnp.float32)
        params = make_params(kp, C_SEG, C_RAW, reduction=16)

        out = fuse_level(raw_feat, seg_feat, params, tile_rows=tr)
        jax.block_until_ready(out)
        ref = reference_fuse(raw_feat, seg_feat, params)
        if out.shape != (N, H, W, C_RAW):
            ok = False
            print(f"MISMATCH: shape at {lvl}")
        if not jnp.allclose(out, ref, atol=2e-3, rtol=2e-3):
            ok = False
            print(f"MISMATCH: values at {lvl}")

    if ok:
        print("KERNEL_OK")
</pallas_src>

<mosaic_0001>
module attributes {stable_mosaic.version = 11 : i64} {
  func.func @_normalize_kernel(%arg0: i32, %arg1: i32, %arg2: memref<1x16x48xf32, #tpu.memory_space<vmem>>, %arg3: memref<1x1x48xf32, #tpu.memory_space<vmem>>, %arg4: memref<1x1x48xf32, #tpu.memory_space<vmem>>, %arg5: memref<1x16x48xf32, #tpu.memory_space<vmem>>) attributes {dimension_semantics = [#tpu.dimension_semantics<parallel>, #tpu.dimension_semantics<parallel>], iteration_bounds = array<i64: 2, 1>, scalar_prefetch = 0 : i64, scratch_operands = 0 : i64, tpu.core_type = #tpu.core_type<tc>, window_params = [{transform_indices = @transform_0, window_bounds = array<i64: 1, 16, 48>}, {pipeline_mode = #tpu.pipeline_mode<synchronous>, transform_indices = @transform_1, window_bounds = array<i64: 1, 1, 48>}, {pipeline_mode = #tpu.pipeline_mode<synchronous>, transform_indices = @transform_2, window_bounds = array<i64: 1, 1, 48>}, {transform_indices = @transform_3, window_bounds = array<i64: 1, 16, 48>}]} {
    %c0 = arith.constant 0 : index
    %c0_0 = arith.constant 0 : index
    %c0_1 = arith.constant 0 : index
    %0 = vector.load %arg2[%c0, %c0_0, %c0_1] : memref<1x16x48xf32, #tpu.memory_space<vmem>>, vector<1x16x48xf32>
    %c0_2 = arith.constant 0 : index
    %c0_3 = arith.constant 0 : index
    %c0_4 = arith.constant 0 : index
    %1 = vector.load %arg3[%c0_2, %c0_3, %c0_4] : memref<1x1x48xf32, #tpu.memory_space<vmem>>, vector<1x1x48xf32>
    %2 = vector.broadcast %1 : vector<1x1x48xf32> to vector<1x16x48xf32>
    %3 = arith.subf %0, %2 : vector<1x16x48xf32>
    %c0_5 = arith.constant 0 : index
    %c0_6 = arith.constant 0 : index
    %c0_7 = arith.constant 0 : index
    %4 = vector.load %arg4[%c0_5, %c0_6, %c0_7] : memref<1x1x48xf32, #tpu.memory_space<vmem>>, vector<1x1x48xf32>
    %5 = vector.broadcast %4 : vector<1x1x48xf32> to vector<1x16x48xf32>
    %6 = arith.mulf %3, %5 : vector<1x16x48xf32>
    %c0_8 = arith.constant 0 : index
    %c0_9 = arith.constant 0 : index
    %c0_10 = arith.constant 0 : index
    %7 = vector.load %arg5[%c0_8, %c0_9, %c0_10] : memref<1x16x48xf32, #tpu.memory_space<vmem>>, vector<1x16x48xf32>
    tpu.vector_store %arg5[%c0_8, %c0_9, %c0_10], %6 {strides = array<i32>} : memref<1x16x48xf32, #tpu.memory_space<vmem>>, vector<1x16x48xf32>,
    return
  }
  func.func @transform_0(%arg0: i32, %arg1: i32) -> (i32, i32, i32) {
    %c0_i32 = arith.constant 0 : i32
    %c0_i32_0 = arith.constant 0 : i32
    return %arg0, %arg1, %c0_i32 : i32, i32, i32
  }
  func.func @transform_1(%arg0: i32, %arg1: i32) -> (i32, i32, i32) {
    %c0_i32 = arith.constant 0 : i32
    %c0_i32_0 = arith.constant 0 : i32
    %c0_i32_1 = arith.constant 0 : i32
    %c0_i32_2 = arith.constant 0 : i32
    return %c0_i32, %c0_i32_0, %c0_i32_1 : i32, i32, i32
  }
  func.func @transform_2(%arg0: i32, %arg1: i32) -> (i32, i32, i32) {
    %c0_i32 = arith.constant 0 : i32
    %c0_i32_0 = arith.constant 0 : i32
    %c0_i32_1 = arith.constant 0 : i32
    %c0_i32_2 = arith.constant 0 : i32
    return %c0_i32, %c0_i32_0, %c0_i32_1 : i32, i32, i32
  }
  func.func @transform_3(%arg0: i32, %arg1: i32) -> (i32, i32, i32) {
    %c0_i32 = arith.constant 0 : i32
    %c0_i32_0 = arith.constant 0 : i32
    return %arg0, %arg1, %c0_i32 : i32, i32, i32
  }
}

</mosaic_0001>

<llo_original>
// kernel: tpu_custom_call.1
$region0: #{tpu_custom_call.1}
  #allocation0 [shape = 'u32[]', space=smem, size = 0x4, offset = 0x4, fixed_abs, tag = 'smem constant byte address 0x4 - core index']
  #allocation1 [shape = 'u32[144,128]{1,0:T(1,128)}', space=vmem, size = 0x12000, scoped, tag = 'internal scratch']
  %s0 = inlined_call_operand.hbm [shape: f32[2,16,48], index: 0, kind: input, shape index: {}]
  %s1 = inlined_call_operand.vmem [shape: f32[1,1,48], index: 1, kind: input, shape index: {}]
  %s2 = inlined_call_operand.vmem [shape: f32[1,1,48], index: 2, kind: input, shape index: {}]
  %s3 = inlined_call_operand.hbm [shape: f32[2,16,48], index: 3, kind: output, shape index: {}]
  %s4 = sld [smem:[#allocation0]]
  $region49: #{tpu_custom_call.1} parent=0
    _
  %s6 = ssub.s32 1, %s4
  %s7 = scalar_select 0, %s6, %s4
  $region1: #{tpu_custom_call.1} parent=0
    #allocation2 [shape = 'u8[16384]{0}', space=vmem, size = 0x4000, scoped, tag = 'input window, operand 0']
    #allocation3 [shape = 's32[2]{0}', space=sflag, size = 0x8, scoped, tag = 'scoped memory for tpu_custom_call.1']
    #allocation4 [shape = 's32[2]{0}', space=sflag, size = 0x8, scoped, tag = 'scoped memory for tpu_custom_call.1']
    #allocation5 [shape = 'u8[16384]{0}', space=vmem, size = 0x4000, scoped, tag = 'output window, operand 0']
    %8 = vsyncpa [#allocation3], 0
    %s9 = scalar_lea.sflag [#allocation3], 1
    %10 = vsyncpa %s9, 0
    %11 = vsyncpa [#allocation4], 0
    %s12 = scalar_lea.sflag [#allocation4], 1
    %13 = vsyncpa %s12, 0
    loop: start=0, step=1, limit=4
    $region2: #{tpu_custom_call.1} parent=1 // loop_pre_header
      _
    $region3: #{tpu_custom_call.1} parent=1 // loop_header
      %s15 = sphi 0, %s19
      %p16 = scmp.ge.s32.totalorder %s15, 4
      %s22 = sphi 0, %s34
      %s23 = sphi 0, %s30
      %s24 = sphi 0, %s22
      %s25 = sphi 0, %s23
      %s26 = sphi 0, %s24
      %s27 = sphi 0, %s25
      %s39 = sphi 0, %s41
      %s42 = sphi 0, %s39
      %s43 = sphi 0, %s42
      %s59 = sphi 0, %s43
      %s63 = sphi 0, %s63
      %s65 = sphi 0, %s63
      %s66 = sphi 0, %s65
      %s80 = sphi 0, %s66
      %s84 = sphi 0, %s84
      %s86 = sphi 0, %s84
      %s87 = sphi 0, %s86
      %s101 = sphi 0, %s87
      %s109 = sphi 0, %s111
      %s112 = sphi 0, %s109
      %s113 = sphi 0, %s112
      %s129 = sphi 0, %s113
    $region4: #{tpu_custom_call.1} parent=1 // loop_header_branch
      %18 = sbr.rel (%p16) target = $region8
    $region5: #{tpu_custom_call.1} parent=1 // loop_body
      %s20 = ssub.s32 %s15, 1
      %s21 = ssub.s32 %s15, 2
      %s28 = sadd.s32 1, %s23
      %p29 = scmp.ge.s32.totalorder %s28, 1
      %s30 = scalar_select %p29, 0, %s28
      %s31 = sadd.s32 1, %s22
      %s32 = scalar_select %p29, %s31, %s22
      %p33 = scmp.ge.s32.totalorder %s32, 2
      %s34 = scalar_select %p33, 0, %s32
      %s35 = ssub.s32 %s22, %s34
      %s36 = ssub.s32 %s23, %s30
      %s37 = sor.u32 %s35, %s36
      %p38 = scmp.eq.s32.totalorder %s37, 0
      %s40 = sadd.s32 %s39, 1
      %s41 = scalar_select %p38, %s39, %s40
      %p44 = pneg %p38
      %p45 = scmp.eq.s32.totalorder %s15, 1
      %p46 = por %p44, %p45
      %p47 = scmp.ne.s32.totalorder %s39, %s42
      %p48 = scmp.eq.s32.totalorder %s15, 0
      %p49 = por %p47, %p48
      %p50 = scmp.ne.s32.totalorder %s39, %s42
      %p51 = scmp.eq.s32.totalorder %s20, 1
      %p52 = por %p50, %p51
      %p53 = scmp.ne.s32.totalorder %s42, %s43
      %p54 = scmp.eq.s32.totalorder %s20, 0
      %p55 = por %p53, %p54
      %p56 = scmp.ne.s32.totalorder %s42, %s43
      %p57 = scmp.eq.s32.totalorder %s21, 1
      %p58 = por %p56, %p57
      %p60 = scmp.ne.s32.totalorder %s43, %s59
      %p61 = scmp.eq.s32.totalorder %s21, 0
      %p62 = por %p60, %p61
      %s64 = sadd.s32 %s63, 1
      %p67 = scmp.eq.s32.totalorder %s15, 1
      %p68 = scmp.ne.s32.totalorder %s63, %s65
      %p69 = scmp.eq.s32.totalorder %s15, 0
      %p70 = por %p68, %p69
      %p71 = scmp.ne.s32.totalorder %s63, %s65
      %p72 = scmp.eq.s32.totalorder %s20, 1
      %p73 = por %p71, %p72
      %p74 = scmp.ne.s32.totalorder %s65, %s66
      %p75 = scmp.eq.s32.totalorder %s20, 0
      %p76 = por %p74, %p75
      %p77 = scmp.ne.s32.totalorder %s65, %s66
      %p78 = scmp.eq.s32.totalorder %s21, 1
      %p79 = por %p77, %p78
      %p81 = scmp.ne.s32.totalorder %s66, %s80
      %p82 = scmp.eq.s32.totalorder %s21, 0
      %p83 = por %p81, %p82
      %s85 = sadd.s32 %s84, 1
      %p88 = scmp.eq.s32.totalorder %s15, 1
      %p89 = scmp.ne.s32.totalorder %s84, %s86
      %p90 = scmp.eq.s32.totalorder %s15, 0
      %p91 = por %p89, %p90
      %p92 = scmp.ne.s32.totalorder %s84, %s86
      %p93 = scmp.eq.s32.totalorder %s20, 1
      %p94 = por %p92, %p93
      %p95 = scmp.ne.s32.totalorder %s86, %s87
      %p96 = scmp.eq.s32.totalorder %s20, 0
      %p97 = por %p95, %p96
      %p98 = scmp.ne.s32.totalorder %s86, %s87
      %p99 = scmp.eq.s32.totalorder %s21, 1
      %p100 = por %p98, %p99
      %p102 = scmp.ne.s32.totalorder %s87, %s101
      %p103 = scmp.eq.s32.totalorder %s21, 0
      %p104 = por %p102, %p103
      %s105 = ssub.s32 %s22, %s34
      %s106 = ssub.s32 %s23, %s30
      %s107 = sor.u32 %s105, %s106
      %p108 = scmp.eq.s32.totalorder %s107, 0
      %s110 = sadd.s32 %s109, 1
      %s111 = scalar_select %p108, %s109, %s110
      %p114 = pneg %p108
      %p115 = scmp.eq.s32.totalorder %s15, 1
      %p116 = por %p114, %p115
      %p117 = scmp.ne.s32.totalorder %s109, %s112
      %p118 = scmp.eq.s32.totalorder %s15, 0
      %p119 = por %p117, %p118
      %p120 = scmp.ne.s32.totalorder %s109, %s112
      %p121 = scmp.eq.s32.totalorder %s20, 1
      %p122 = por %p120, %p121
      %p123 = scmp.ne.s32.totalorder %s112, %s113
      %p124 = scmp.eq.s32.totalorder %s20, 0
      %p125 = por %p123, %p124
      %p126 = scmp.ne.s32.totalorder %s112, %s113
      %p127 = scmp.eq.s32.totalorder %s21, 1
      %p128 = por %p126, %p127
      %p130 = scmp.ne.s32.totalorder %s113, %s129
      %p131 = scmp.eq.s32.totalorder %s21, 0
      %p132 = por %p130, %p131
      %p133 = scmp.le.s32.totalorder 1, %s15
      %p134 = scmp.lt.s32.totalorder %s15, 3
      %p135 = pnand %p133, %p134
      %p136 = pneg %p135
      // Predicated region
      $region9: #{tpu_custom_call.1} parent=5 // pred_check
        _
      $region10: #{tpu_custom_call.1} parent=5 // pred_check_branch
        %138 = sbr.rel (%p135) target = $region12
      $region11: #{tpu_custom_call.1} parent=5 // pred_region
        %s139 = ssub.s32 %s15, 1
        // Predicated region
        $region13: #{tpu_custom_call.1} parent=11 // pred_check
          %p140 = pneg %p76
        $region14: #{tpu_custom_call.1} parent=11 // pred_check_branch
          %142 = sbr.rel (%p140) target = $region16
        $region15: #{tpu_custom_call.1} parent=11 // pred_region
          _
        $region16: #{tpu_custom_call.1} parent=11 // pred_fallthru
          _
        // Predicated region
        $region17: #{tpu_custom_call.1} parent=11 // pred_check
          %p143 = pneg %p97
        $region18: #{tpu_custom_call.1} parent=11 // pred_check_branch
          %145 = sbr.rel (%p143) target = $region20
        $region19: #{tpu_custom_call.1} parent=11 // pred_region
          _
        $region20: #{tpu_custom_call.1} parent=11 // pred_fallthru
          _
      $region12: #{tpu_custom_call.1} parent=5 // pred_fallthru
        _
      %p146 = scmp.lt.s32.totalorder %s15, 2
      // Predicated region
      $region21: #{tpu_custom_call.1} parent=5 // pred_check
        %p147 = pneg %p146
      $region22: #{tpu_custom_call.1} parent=5 // pred_check_branch
        %149 = sbr.rel (%p147) target = $region24
      $region23: #{tpu_custom_call.1} parent=5 // pred_region
        // Predicated region
        $region25: #{tpu_custom_call.1} parent=23 // pred_check
          %p150 = pneg %p49
        $region26: #{tpu_custom_call.1} parent=23 // pred_check_branch
          %152 = sbr.rel (%p150) target = $region28
        $region27: #{tpu_custom_call.1} parent=23 // pred_region
          %s153 = sand.u32 %s39, 1
          %s154 = scalar_lea.sflag [#allocation3], %s153
          %s155 = sand.u32 %s39, 1
          %s156 = smul.addr %s155, 16
          %s157 = scalar_lea.vmem [#allocation2], %s156
          %s158 = smul.u32 2, %s23
          %s160 = ssub.s32 256, 256
          %161 = vsyncadd %s154, %s160
          %s162 = smul.addr %s22, 2
          %s163 = sadd.s32 %s158, %s162
          %s164 = smul.addr %s163, 128
          %s165 = scalar_lea.hbm %s0, %s164
          %s166 = sshll.u32 %s157, 4
          %s167 = int_to_ptr.vmem [resolvable:$true] %s166
          %172 = dma.hbm_to_vmem [thread:$0]  %s165, 256, %s167, %s154, 128, 128, 8
        $region28: #{tpu_custom_call.1} parent=23 // pred_fallthru
          _
      $region24: #{tpu_custom_call.1} parent=5 // pred_fallthru
        _
      %p173 = scmp.le.s32.totalorder 1, %s15
      %p174 = scmp.lt.s32.totalorder %s15, 3
      %p175 = pnand %p173, %p174
      %p176 = pneg %p175
      // Predicated region
      $region29: #{tpu_custom_call.1} parent=5 // pred_check
        _
      $region30: #{tpu_custom_call.1} parent=5 // pred_check_branch
        %178 = sbr.rel (%p175) target = $region32
      $region31: #{tpu_custom_call.1} parent=5 // pred_region
        %s179 = ssub.s32 %s15, 1
        %s180 = sand.u32 %s42, 1
        %s181 = scalar_lea.sflag [#allocation3], %s180
        %s182 = sand.u32 %s42, 1
        %s183 = smul.addr %s182, 16
        %s184 = scalar_lea.vmem [#allocation2], %s183
        // Predicated region
        $region33: #{tpu_custom_call.1} parent=31 // pred_check
          %p185 = pneg %p55
        $region34: #{tpu_custom_call.1} parent=31 // pred_check_branch
          %187 = sbr.rel (%p185) target = $region36
        $region35: #{tpu_custom_call.1} parent=31 // pred_region
          %188 = dma.done %s181, 256
        $region36: #{tpu_custom_call.1} parent=31 // pred_fallthru
          _
        %s189 = sand.u32 %s42, 1
        %s190 = scalar_lea.sflag [#allocation3], %s189
        %s191 = sand.u32 %s42, 1
        %s192 = smul.addr %s191, 16
        %s193 = scalar_lea.vmem [#allocation2], %s192
        %p194 = pneg %p55
        %p195 = pneg %p52
        %p196 = pneg %p76
        %p197 = pneg %p73
        %p198 = pneg %p97
        %p199 = pneg %p94
        %p200 = pneg %p125
        %p201 = pneg %p122
        %s202 = sand.u32 %s112, 1
        %s203 = scalar_lea.sflag [#allocation4], %s202
        %s204 = sand.u32 %s112, 1
        %s205 = smul.addr %s204, 16
        %s206 = scalar_lea.vmem [#allocation5], %s205
        %s207 = smul.u32 2, %s25
        %s208 = smul.u32 2, %s25
        %v209 = vld [vmem:[%s184] sm:$0xff]
        %v210 = vld [vmem:[%s184 + $0x8] sm:$0xff]
        %v211 = vld [vmem:[%s1] sm:$0x1]
        %v213 = vlaneseq
        %v214 = vshrl.u32 %v213, 7
        %v215 = vsub.s32 0, %v214
        %v216 = vrot.slane %v211, %v215
        %v218 = vsub.f32 %v209, %v216
        %v219 = vsub.f32 %v210, %v216
        %v220 = vld [vmem:[%s2] sm:$0x1]
        %v222 = vlaneseq
        %v223 = vshrl.u32 %v222, 7
        %v224 = vsub.s32 0, %v223
        %v225 = vrot.slane %v220, %v224
        %v227 = vmul.f32 %v218, %v225
        %v228 = vmul.f32 %v219, %v225
        %vm229 = vcmask 392192
        %230 = vst.msk [vmem:[%s206] sm:$0xff] %vm229, %v227
        %231 = vst.msk [vmem:[%s206 + $0x8] sm:$0xff] %vm229, %v228
        %s232 = sand.u32 %s112, 1
        %s233 = scalar_lea.sflag [#allocation4], %s232
        %s234 = sand.u32 %s112, 1
        %s235 = smul.addr %s234, 16
        %s236 = scalar_lea.vmem [#allocation5], %s235
        // Predicated region
        $region37: #{tpu_custom_call.1} parent=31 // pred_check
          %p237 = pneg %p122
        $region38: #{tpu_custom_call.1} parent=31 // pred_check_branch
          %239 = sbr.rel (%p237) target = $region40
        $region39: #{tpu_custom_call.1} parent=31 // pred_region
          %s240 = smul.u32 2, %s25
          %s242 = ssub.s32 256, 256
          %243 = vsyncadd %s233, %s242
          %s244 = smul.addr %s24, 2
          %s245 = sadd.s32 %s240, %s244
          %s246 = smul.addr %s245, 128
          %s247 = scalar_lea.hbm %s3, %s246
          %s248 = sshll.u32 %s236, 4
          %s249 = int_to_ptr.vmem [resolvable:$true] %s248
          %254 = dma.vmem_to_hbm [thread:$0]  %s249, 256, %s247, %s233, 128, 128, 8
        $region40: #{tpu_custom_call.1} parent=31 // pred_fallthru
          _
      $region32: #{tpu_custom_call.1} parent=5 // pred_fallthru
        _
      %p255 = scmp.le.s32.totalorder 2, %s15
      // Predicated region
      $region41: #{tpu_custom_call.1} parent=5 // pred_check
        %p256 = pneg %p255
      $region42: #{tpu_custom_call.1} parent=5 // pred_check_branch
        %258 = sbr.rel (%p256) target = $region44
      $region43: #{tpu_custom_call.1} parent=5 // pred_region
        %s259 = ssub.s32 %s15, 2
        // Predicated region
        $region45: #{tpu_custom_call.1} parent=43 // pred_check
          %p260 = pneg %p128
        $region46: #{tpu_custom_call.1} parent=43 // pred_check_branch
          %262 = sbr.rel (%p260) target = $region48
        $region47: #{tpu_custom_call.1} parent=43 // pred_region
          %s263 = sand.u32 %s113, 1
          %s264 = scalar_lea.sflag [#allocation4], %s263
          %s265 = sand.u32 %s113, 1
          %s266 = smul.addr %s265, 16
          %s267 = scalar_lea.vmem [#allocation5], %s266
          %268 = dma.done %s264, 256
        $region48: #{tpu_custom_call.1} parent=43 // pred_fallthru
          _
      $region44: #{tpu_custom_call.1} parent=5 // pred_fallthru
        _
    $region6: #{tpu_custom_call.1} parent=1 // loop_footer
      %s19 = sadd.s32 1, %s15
    $region7: #{tpu_custom_call.1} parent=1 // loop_footer_branch
      %14 = sbr.rel target = $region3
    $region8: #{tpu_custom_call.1} parent=1 // loop_exit
      _
    %269 = vsyncpa [#allocation3], 1
    %s270 = scalar_lea.sflag [#allocation3], 1
    %271 = vsyncpa %s270, 1
    %272 = vsyncpa [#allocation4], 1
    %s273 = scalar_lea.sflag [#allocation4], 1
    %274 = vsyncpa %s273, 1

</llo_original>
